<compile_context>
chip_gen: v7x
topology: tpu7x:2x2x1
jax: 0.10.0
libtpu: 0.0.40
codegen_flags: <defaults>
</compile_context>

<pallas_src>
import math
import jax
import jax.numpy as jnp
from jax import lax
from jax.experimental import pallas as pl
from jax.experimental.pallas import tpu as pltpu


# ---------------------------------------------------------------------------
# Helpers
# ---------------------------------------------------------------------------
def _pair(v):
    return (v, v) if isinstance(v, int) else tuple(v)


def _round_up(x, m):
    return (x + m - 1) // m * m


# ---------------------------------------------------------------------------
# Pallas matmul kernels (bf16 operands, f32 accumulation)
# ---------------------------------------------------------------------------
def _matmul_fullk_kernel(a_ref, b_ref, o_ref):
    a = a_ref[...].astype(jnp.bfloat16)
    b = b_ref[...].astype(jnp.bfloat16)
    o_ref[...] = jnp.dot(a, b, preferred_element_type=jnp.float32)


def _matmul_ktiled_kernel(a_ref, b_ref, o_ref, acc_ref):
    @pl.when(pl.program_id(2) == 0)
    def _():
        acc_ref[...] = jnp.zeros_like(acc_ref)

    acc_ref[...] += jnp.dot(a_ref[...].astype(jnp.bfloat16),
                            b_ref[...].astype(jnp.bfloat16),
                            preferred_element_type=jnp.float32)

    @pl.when(pl.program_id(2) == pl.num_programs(2) - 1)
    def _():
        o_ref[...] = acc_ref[...].astype(o_ref.dtype)


_FULL_K_MAX = 2560   # full-K blocks up to this contraction size
_TK = 512            # K tile when the contraction is tiled


def pallas_matmul(a, b):
    """(M, K) @ (K, N) -> (M, N) float32.  b is typically bf16 weights."""
    M, K = a.shape
    K2, N = b.shape
    assert K == K2
    if M < 8 or K < 8 or N < 8:
        # Degenerate projections (e.g. 96->1, 1->num_classes): the MXU gives
        # nothing here; let XLA do the tiny reduction.
        return jnp.dot(a.astype(jnp.float32), b.astype(jnp.float32))

    tm = 256 if M >= 256 else M
    if N >= 256 and N % 256 == 0:
        tn = 256
    elif N >= 128 and N % 128 == 0:
        tn = 128
    else:
        tn = N                       # full-N block (lane-masked if N < 128)
    gm, gn = pl.cdiv(M, tm), pl.cdiv(N, tn)

    if K <= _FULL_K_MAX:
        return pl.pallas_call(
            _matmul_fullk_kernel,
            out_shape=jax.ShapeDtypeStruct((M, N), jnp.float32),
            grid_spec=pltpu.PrefetchScalarGridSpec(
                num_scalar_prefetch=0,
                grid=(gm, gn),
                in_specs=[pl.BlockSpec((tm, K), lambda i, j: (i, 0)),
                          pl.BlockSpec((K, tn), lambda i, j: (0, j))],
                out_specs=pl.BlockSpec((tm, tn), lambda i, j: (i, j))),
            compiler_params=pltpu.CompilerParams(
                dimension_semantics=("parallel", "parallel")),
        )(a, b)

    Kp = _round_up(K, _TK)
    if Kp != K:                      # channel counts are static; rarely hit
        a = jnp.pad(a, ((0, 0), (0, Kp - K)))
        b = jnp.pad(b, ((0, Kp - K), (0, 0)))
    return pl.pallas_call(
        _matmul_ktiled_kernel,
        out_shape=jax.ShapeDtypeStruct((M, N), jnp.float32),
        grid_spec=pltpu.PrefetchScalarGridSpec(
            num_scalar_prefetch=0,
            grid=(gm, gn, Kp // _TK),
            in_specs=[pl.BlockSpec((tm, _TK), lambda i, j, k: (i, k)),
                      pl.BlockSpec((_TK, tn), lambda i, j, k: (k, j))],
            out_specs=pl.BlockSpec((tm, tn), lambda i, j, k: (i, j)),
            scratch_shapes=[pltpu.VMEM((tm, tn), jnp.float32)]),
        compiler_params=pltpu.CompilerParams(
            dimension_semantics=("parallel", "parallel", "arbitrary")),
    )(a, b)


# ---------------------------------------------------------------------------
# Batched matmul (self-attention products) -- one pallas_call over the batch
# ---------------------------------------------------------------------------
def _bmm_kernel(a_ref, b_ref, o_ref):
    o_ref[0] = jnp.dot(a_ref[0].astype(jnp.bfloat16),
                       b_ref[0].astype(jnp.bfloat16),
                       preferred_element_type=jnp.float32)


def pallas_bmm(a, b):
    """(B, M, K) @ (B, K, N) -> (B, M, N) float32."""
    B, M, K = a.shape
    _, _, N = b.shape
    if M < 8 or K < 8 or N < 8:
        # Tiny attention maps: overhead-bound, keep in XLA.
        return jnp.matmul(a.astype(jnp.float32), b.astype(jnp.float32))
    return pl.pallas_call(
        _bmm_kernel,
        out_shape=jax.ShapeDtypeStruct((B, M, N), jnp.float32),
        grid_spec=pltpu.PrefetchScalarGridSpec(
            num_scalar_prefetch=0,
            grid=(B,),
            in_specs=[pl.BlockSpec((1, M, K), lambda i: (i, 0, 0)),
                      pl.BlockSpec((1, K, N), lambda i: (i, 0, 0))],
            out_specs=pl.BlockSpec((1, M, N), lambda i: (i, 0, 0))),
        compiler_params=pltpu.CompilerParams(
            dimension_semantics=("parallel",)),
    )(a, b)


# ---------------------------------------------------------------------------
# Implicit-GEMM convolution (stride 1): taps accumulate inside the kernel
# ---------------------------------------------------------------------------
def _make_implicit_conv_kernel(kh, kw, dh, dw, oh, ow, cin, cout):
    def kernel(x_ref, w_ref, o_ref):
        acc = jnp.zeros((oh * ow, cout), jnp.float32)
        for ky in range(kh):
            for kx in range(kw):
                xs = x_ref[0, ky * dh:ky * dh + oh, kx * dw:kx * dw + ow, :]
                xs = xs.astype(jnp.bfloat16).reshape(oh * ow, cin)
                acc = acc + jnp.dot(xs, w_ref[ky, kx],
                                    preferred_element_type=jnp.float32)
        o_ref[0] = acc.astype(o_ref.dtype)
    return kernel


def implicit_conv(x, w, padding, dilation):
    """Stride-1 conv; x NHWC f32, w (KH, KW, Cin, Cout) bf16."""
    n, h, wd, cin = x.shape
    kh, kw, _, cout = w.shape
    ph, pw = padding
    dh, dw = dilation
    oh = h + 2 * ph - dh * (kh - 1)
    ow = wd + 2 * pw - dw * (kw - 1)
    xp = jnp.pad(x, ((0, 0), (ph, ph), (pw, pw), (0, 0)))
    hp, wp = h + 2 * ph, wd + 2 * pw
    out = pl.pallas_call(
        _make_implicit_conv_kernel(kh, kw, dh, dw, oh, ow, cin, cout),
        out_shape=jax.ShapeDtypeStruct((n, oh * ow, cout), jnp.float32),
        grid_spec=pltpu.PrefetchScalarGridSpec(
            num_scalar_prefetch=0,
            grid=(n,),
            in_specs=[pl.BlockSpec((1, hp, wp, cin), lambda i: (i, 0, 0, 0)),
                      pl.BlockSpec((kh, kw, cin, cout),
                                   lambda i: (0, 0, 0, 0))],
            out_specs=pl.BlockSpec((1, oh * ow, cout), lambda i: (i, 0, 0))),
        compiler_params=pltpu.CompilerParams(
            dimension_semantics=("parallel",)),
    )(xp, w)
    return out.reshape(n, oh, ow, cout)


# ---------------------------------------------------------------------------
# im2col fallback (strided or tiny-spatial convs), built directly in bf16
# ---------------------------------------------------------------------------
def _im2col_bf16(x, kh, kw, stride, padding, dilation):
    n, h, w, c = x.shape
    sh, sw = stride
    ph, pw = padding
    dh, dw = dilation
    oh = (h + 2 * ph - dh * (kh - 1) - 1) // sh + 1
    ow = (w + 2 * pw - dw * (kw - 1) - 1) // sw + 1
    xp = jnp.pad(x.astype(jnp.bfloat16), ((0, 0), (ph, ph), (pw, pw), (0, 0)))
    cols = []
    for ky in range(kh):
        for kx in range(kw):
            y0, x0 = ky * dh, kx * dw
            patch = lax.slice(
                xp, (0, y0, x0, 0),
                (n, y0 + (oh - 1) * sh + 1, x0 + (ow - 1) * sw + 1, c),
                (1, sh, sw, 1))
            cols.append(patch)                       # (n, oh, ow, c)
    patches = jnp.stack(cols, axis=3)                # (n, oh, ow, kh*kw, c)
    return patches.reshape(n * oh * ow, kh * kw * c), oh, ow


_IMPLICIT_VMEM_BUDGET = 8 * 1024 * 1024


def conv2d(x, p):
    """NHWC convolution dispatcher."""
    w = p['w']
    stride, padding, dilation, groups = (p['stride'], p['padding'],
                                         p['dilation'], p['groups'])
    kh, kw = p['kh'], p['kw']
    n, h, wd, cin = x.shape
    if groups > 1:
        # Tiny grouped dilated convs (CFPModule); overhead-bound -> XLA.
        y = lax.conv_general_dilated(
            x, w, window_strides=stride,
            padding=[(padding[0], padding[0]), (padding[1], padding[1])],
            rhs_dilation=dilation,
            dimension_numbers=('NHWC', 'HWIO', 'NHWC'),
            feature_group_count=groups)
    elif kh == 1 and kw == 1 and stride == (1, 1) and padding == (0, 0):
        cout = w.shape[-1]
        y = pallas_matmul(x.reshape(n * h * wd, cin),
                          w.reshape(cin, cout)).reshape(n, h, wd, cout)
    else:
        sh, sw = stride
        ph, pw = padding
        dh, dw = dilation
        cout = w.shape[-1]
        oh = (h + 2 * ph - dh * (kh - 1) - 1) // sh + 1
        ow = (wd + 2 * pw - dw * (kw - 1) - 1) // sw + 1
        vmem_est = ((h + 2 * ph) * (wd + 2 * pw) * cin * 4
                    + kh * kw * cin * cout * 2 + oh * ow * cout * 4)
        if (stride == (1, 1) and ow % 8 == 0 and cout >= 8 and cin >= 8
                and 2 * vmem_est <= _IMPLICIT_VMEM_BUDGET):
            y = implicit_conv(x, w, padding, dilation)
        else:
            patches, oh, ow = _im2col_bf16(x, kh, kw, stride, padding,
                                           dilation)
            y = pallas_matmul(patches, w.reshape(kh * kw * cin, cout))
            y = y.reshape(n, oh, ow, cout)
    if p['bias'] is not None:
        y = y + p['bias']
    return y


# ---------------------------------------------------------------------------
# Fused BatchNorm (batch statistics) + PReLU -- row-tiled Pallas VPU kernel
# ---------------------------------------------------------------------------
def _bn_prelu_kernel(x_ref, scale_ref, shift_ref, alpha_ref, o_ref):
    y = x_ref[...] * scale_ref[...] + shift_ref[...]
    o_ref[...] = jnp.where(y >= 0, y, alpha_ref[...] * y)


def bn_prelu(x, gamma, beta, alpha, eps):
    """BatchNorm (train-mode batch stats, like nn.BatchNorm2d default) +
    PReLU on an NHWC tensor.  Stats via one XLA reduction; the normalize +
    activation pass is a tiled Pallas kernel."""
    n, h, w, c = x.shape
    m = n * h * w
    xm = x.reshape(m, c)
    mean = jnp.mean(xm, axis=0)
    var = jnp.mean(jnp.square(xm - mean[None, :]), axis=0)
    rstd = lax.rsqrt(var + eps)
    scale = (gamma * rstd).reshape(1, c)
    shift = (beta - mean * gamma * rstd).reshape(1, c)
    tm = 256 if m >= 256 else m
    out = pl.pallas_call(
        _bn_prelu_kernel,
        out_shape=jax.ShapeDtypeStruct((m, c), jnp.float32),
        grid_spec=pltpu.PrefetchScalarGridSpec(
            num_scalar_prefetch=0,
            grid=(pl.cdiv(m, tm),),
            in_specs=[pl.BlockSpec((tm, c), lambda i: (i, 0)),
                      pl.BlockSpec((1, c), lambda i: (0, 0)),
                      pl.BlockSpec((1, c), lambda i: (0, 0)),
                      pl.BlockSpec((1, c), lambda i: (0, 0))],
            out_specs=pl.BlockSpec((tm, c), lambda i: (i, 0))),
        compiler_params=pltpu.CompilerParams(
            dimension_semantics=("parallel",)),
    )(xm, scale, shift, alpha.reshape(1, c))
    return out.reshape(n, h, w, c)


# ---------------------------------------------------------------------------
# Parameter helpers (deterministic, in-script init)
# ---------------------------------------------------------------------------
def init_conv(key, n_in, n_out, k, stride=1, padding=0, dilation=1,
              groups=1, bn_acti=False, bias=False, bn_eps=1e-3, relu=False):
    kh, kw = _pair(k)
    fan_in = (n_in // groups) * kh * kw
    w = jax.random.normal(key, (n_out, n_in // groups, kh, kw),
                          jnp.float32) / math.sqrt(fan_in)
    w = jnp.transpose(w, (2, 3, 1, 0))               # (KH, KW, Cin/g, Cout)
    w = w.astype(jnp.float32 if groups > 1 else jnp.bfloat16)
    p = {'w': w, 'kh': kh, 'kw': kw, 'stride': _pair(stride),
         'padding': _pair(padding), 'dilation': _pair(dilation),
         'groups': groups,
         'bias': jnp.zeros((n_out,), jnp.float32) if bias else None}
    if bn_acti:
        alpha = (jnp.zeros((n_out,), jnp.float32) if relu
                 else jnp.full((n_out,), 0.25, jnp.float32))
        p['bn'] = {'gamma': jnp.ones((n_out,), jnp.float32),
                   'beta': jnp.zeros((n_out,), jnp.float32),
                   'alpha': alpha, 'eps': bn_eps}
    return p


def apply_conv(p, x):
    y = conv2d(x, p)
    if 'bn' in p:
        bn = p['bn']
        y = bn_prelu(y, bn['gamma'], bn['beta'], bn['alpha'], bn['eps'])
    return y


def init_bnprelu(n):
    return {'gamma': jnp.ones((n,), jnp.float32),
            'beta': jnp.zeros((n,), jnp.float32),
            'alpha': jnp.full((n,), 0.25, jnp.float32), 'eps': 1e-3}


def apply_bnprelu(p, x):
    return bn_prelu(x, p['gamma'], p['beta'], p['alpha'], p['eps'])


# ---------------------------------------------------------------------------
# Resize / pooling glue (NHWC)
# ---------------------------------------------------------------------------
def _resize_coords(out_size, in_size, align_corners):
    if align_corners:
        if out_size == 1:
            src = jnp.zeros((out_size,), jnp.float32)
        else:
            src = jnp.arange(out_size, dtype=jnp.float32) * (
                (in_size - 1) / (out_size - 1))
    else:
        scale = in_size / out_size
        src = (jnp.arange(out_size, dtype=jnp.float32) + 0.5) * scale - 0.5
        src = jnp.clip(src, 0.0, float(in_size - 1))
    i0 = jnp.clip(jnp.floor(src).astype(jnp.int32), 0, in_size - 1)
    i1 = jnp.minimum(i0 + 1, in_size - 1)
    frac = src - i0.astype(jnp.float32)
    return i0, i1, frac


def bilinear_resize(x, out_h, out_w, align_corners):
    n, h, w, c = x.shape
    y0, y1, fy = _resize_coords(out_h, h, align_corners)
    x0, x1, fx = _resize_coords(out_w, w, align_corners)
    r0 = x[:, y0, :, :]
    r1 = x[:, y1, :, :]
    rows = r0 + (r1 - r0) * fy[None, :, None, None]
    c0 = rows[:, :, x0, :]
    c1 = rows[:, :, x1, :]
    return c0 + (c1 - c0) * fx[None, None, :, None]


def resize_scale(x, sf, align_corners=False):
    _, h, w, _ = x.shape
    return bilinear_resize(x, int(math.floor(h * sf)),
                           int(math.floor(w * sf)), align_corners)


def maxpool_3x3_s2_p1(x):
    return lax.reduce_window(x, -jnp.inf, lax.max,
                             (1, 3, 3, 1), (1, 2, 2, 1),
                             [(0, 0), (1, 1), (1, 1), (0, 0)])


# ---------------------------------------------------------------------------
# self_attn / AA_kernel / CFPModule / aggregation
# ---------------------------------------------------------------------------
def init_self_attn(key, c):
    k1, k2, k3 = jax.random.split(key, 3)
    return {'query': init_conv(k1, c, c // 8, 1),
            'key': init_conv(k2, c, c // 8, 1),
            'value': init_conv(k3, c, c, 1),
            'gamma': jnp.zeros((1,), jnp.float32)}


def self_attn_fwd(p, x, mode):
    b, h, w, c = x.shape
    axis = 1
    if 'h' in mode:
        axis *= h
    if 'w' in mode:
        axis *= w

    def to_view(t):        # NHWC -> contiguous NCHW .view(b, -1, axis)
        return jnp.transpose(t, (0, 3, 1, 2)).reshape(b, -1, axis)

    q = to_view(apply_conv(p['query'], x))
    k = to_view(apply_conv(p['key'], x))
    v = to_view(apply_conv(p['value'], x))
    pq = jnp.transpose(q, (0, 2, 1))
    attn = jax.nn.sigmoid(pallas_bmm(pq, k))          # torch uses Sigmoid
    out = pallas_bmm(v, jnp.transpose(attn, (0, 2, 1)))
    out = jnp.transpose(out.reshape(b, c, h, w), (0, 2, 3, 1))
    return p['gamma'] * out + x


def init_aa(key, cin, cout):
    k0, k1, k2, k3 = jax.random.split(key, 4)
    return {'conv0': init_conv(k0, cin, cout, 1),
            'conv1': init_conv(k1, cout, cout, 3, padding=1),
            'Hattn': init_self_attn(k2, cout),
            'Wattn': init_self_attn(k3, cout)}


def aa_kernel_fwd(p, x):
    x = apply_conv(p['conv0'], x)
    x = apply_conv(p['conv1'], x)
    hx = self_attn_fwd(p['Hattn'], x, 'h')
    return self_attn_fwd(p['Wattn'], hx, 'w')


def init_cfp(key, n_in, d=1):
    ks = jax.random.split(key, 16)
    dils = [1, int(d / 4 + 1), int(d / 2 + 1), d + 1]
    g = n_in // 16
    p = {'bn_relu_1': init_bnprelu(n_in), 'bn_relu_2': init_bnprelu(n_in),
         'conv1x1_1': init_conv(ks[0], n_in, n_in // 4, 3, padding=1,
                                bn_acti=True),
         'conv1x1': init_conv(ks[1], n_in, n_in, 1, padding=0)}
    idx = 2
    for br, dil in enumerate(dils, start=1):
        p[f'dconv_{br}_1'] = init_conv(ks[idx], n_in // 4, n_in // 16, 3,
                                       padding=dil, dilation=dil, groups=g,
                                       bn_acti=True); idx += 1
        p[f'dconv_{br}_2'] = init_conv(ks[idx], n_in // 16, n_in // 16, 3,
                                       padding=dil, dilation=dil, groups=g,
                                       bn_acti=True); idx += 1
        p[f'dconv_{br}_3'] = init_conv(ks[idx], n_in // 16, n_in // 8, 3,
                                       padding=dil, dilation=dil, groups=g,
                                       bn_acti=True); idx += 1
    return p


def cfp_fwd(p, x):
    inp = apply_bnprelu(p['bn_relu_1'], x)
    inp = apply_conv(p['conv1x1_1'], inp)
    outs = []
    for br in (1, 2, 3, 4):
        o1 = apply_conv(p[f'dconv_{br}_1'], inp)
        o2 = apply_conv(p[f'dconv_{br}_2'], o1)
        o3 = apply_conv(p[f'dconv_{br}_3'], o2)
        outs.append(jnp.concatenate([o1, o2, o3], axis=-1))
    ad1 = outs[0]
    ad2 = ad1 + outs[1]
    ad3 = ad2 + outs[2]
    ad4 = ad3 + outs[3]
    out = jnp.concatenate([ad1, ad2, ad3, ad4], axis=-1)
    out = apply_bnprelu(p['bn_relu_2'], out)
    out = apply_conv(p['conv1x1'], out)
    return out + x


def init_aggregation(key, channel=32):
    ks = jax.random.split(key, 10)
    return {'conv_upsample1': init_conv(ks[0], 32, 32, 3, padding=1),
            'conv_upsample2': init_conv(ks[1], 32, 32, 3, padding=1),
            'conv_upsample3': init_conv(ks[2], 32, 32, 3, padding=1),
            'conv_upsample4': init_conv(ks[3], 32, 32, 3, padding=1),
            'conv_upsample5': init_conv(ks[4], 64, 64, 3, padding=1),
            'conv_concat2': init_conv(ks[5], 64, 64, 3, padding=1),
            'conv_concat3': init_conv(ks[6], 96, 96, 3, padding=1),
            'conv4': init_conv(ks[7], 96, 96, 3, padding=1),
            'conv5': init_conv(ks[8], 96, 1, 1, bias=True)}


def aggregation_fwd(p, x1, x2, x3):
    up = lambda t: bilinear_resize(t, t.shape[1] * 2, t.shape[2] * 2, True)
    x1_1 = x1
    x2_1 = apply_conv(p['conv_upsample1'], up(x1)) * x2
    x3_1 = (apply_conv(p['conv_upsample2'], up(up(x1)))
            * apply_conv(p['conv_upsample3'], up(x2)) * x3)
    x2_2 = jnp.concatenate(
        [x2_1, apply_conv(p['conv_upsample4'], up(x1_1))], -1)
    x2_2 = apply_conv(p['conv_concat2'], x2_2)
    x3_2 = jnp.concatenate(
        [x3_1, apply_conv(p['conv_upsample5'], up(x2_2))], -1)
    x3_2 = apply_conv(p['conv_concat3'], x3_2)
    x = apply_conv(p['conv4'], x3_2)
    x = apply_conv(p['conv5'], x)
    return x


# ---------------------------------------------------------------------------
# caranet
# ---------------------------------------------------------------------------
def init_caranet(key, channel=32, num_classes=20):
    ks = iter(jax.random.split(key, 64))
    nk = lambda: next(ks)
    # TODO(synk): res2net101_v1b_26w_4s is not defined in the source module;
    # replaced by a minimal deterministic stand-in with the same channel
    # counts / strides.
    p = {'resnet': {
            'conv1': init_conv(nk(), 3, 64, 7, stride=2, padding=3,
                               bn_acti=True, bn_eps=1e-5, relu=True),
            'layer1': init_conv(nk(), 64, 256, 3, stride=1, padding=1,
                                bn_acti=True, bn_eps=1e-5, relu=True),
            'layer2': init_conv(nk(), 256, 512, 3, stride=2, padding=1,
                                bn_acti=True, bn_eps=1e-5, relu=True),
            'layer3': init_conv(nk(), 512, 1024, 3, stride=2, padding=1,
                                bn_acti=True, bn_eps=1e-5, relu=True),
            'layer4': init_conv(nk(), 1024, 2048, 3, stride=2, padding=1,
                                bn_acti=True, bn_eps=1e-5, relu=True)},
         'rfb2_1': init_conv(nk(), 512, 32, 3, padding=1, bn_acti=True),
         'rfb3_1': init_conv(nk(), 1024, 32, 3, padding=1, bn_acti=True),
         'rfb4_1': init_conv(nk(), 2048, 32, 3, padding=1, bn_acti=True),
         'agg1': init_aggregation(nk(), channel),
         'CFP_1': init_cfp(nk(), 32, d=8),
         'CFP_2': init_cfp(nk(), 32, d=8),
         'CFP_3': init_cfp(nk(), 32, d=8),
         'aa_kernel_1': init_aa(nk(), 32, 32),
         'aa_kernel_2': init_aa(nk(), 32, 32),
         'aa_kernel_3': init_aa(nk(), 32, 32),
         'final_1': init_conv(nk(), 1, num_classes, 1, bias=True),
         'final_2': init_conv(nk(), 1, num_classes, 1, bias=True),
         'final_3': init_conv(nk(), 1, num_classes, 1, bias=True),
         'final_5': init_conv(nk(), 1, num_classes, 1, bias=True)}
    for i in (1, 2, 3):
        p[f'ra{i}_conv1'] = init_conv(nk(), 32, 32, 3, padding=1, bn_acti=True)
        p[f'ra{i}_conv2'] = init_conv(nk(), 32, 32, 3, padding=1, bn_acti=True)
        p[f'ra{i}_conv3'] = init_conv(nk(), 32, 1, 3, padding=1, bn_acti=True)
    return p


def caranet_fwd(p, x_nchw):
    x = jnp.transpose(x_nchw, (0, 2, 3, 1))      # single NCHW->NHWC transpose
    r = p['resnet']
    h = apply_conv(r['conv1'], x)                # stem conv + BN + ReLU
    h = maxpool_3x3_s2_p1(h)
    x1 = apply_conv(r['layer1'], h)
    x2 = apply_conv(r['layer2'], x1)
    x3 = apply_conv(r['layer3'], x2)
    x4 = apply_conv(r['layer4'], x3)

    x2_rfb = apply_conv(p['rfb2_1'], x2)
    x3_rfb = apply_conv(p['rfb3_1'], x3)
    x4_rfb = apply_conv(p['rfb4_1'], x4)

    decoder_1 = aggregation_fwd(p['agg1'], x4_rfb, x3_rfb, x2_rfb)
    lateral_map_1 = resize_scale(decoder_1, 8)
    decoder_2 = resize_scale(decoder_1, 0.25)

    cfp_out_1 = cfp_fwd(p['CFP_3'], x4_rfb)
    decoder_2_ra = -1.0 * jax.nn.sigmoid(decoder_2) + 1.0
    aa_atten_3 = aa_kernel_fwd(p['aa_kernel_3'], cfp_out_1)
    aa_atten_3_o = jnp.broadcast_to(
        decoder_2_ra, decoder_2_ra.shape[:3] + (32,)) * aa_atten_3
    ra_3 = apply_conv(p['ra3_conv1'], aa_atten_3_o)
    ra_3 = apply_conv(p['ra3_conv2'], ra_3)
    ra_3 = apply_conv(p['ra3_conv3'], ra_3)
    x_3 = ra_3 + decoder_2
    lateral_map_2 = resize_scale(x_3, 32)
    decoder_3 = resize_scale(x_3, 2)

    # Matches the provided PyTorch forward: CFP_3 is applied to x3_rfb
    # (CFP_2 exists but is unused in the reference forward).
    cfp_out_2 = cfp_fwd(p['CFP_3'], x3_rfb)
    decoder_3_ra = -1.0 * jax.nn.sigmoid(decoder_3) + 1.0
    aa_atten_2 = aa_kernel_fwd(p['aa_kernel_2'], cfp_out_2)
    aa_atten_2_o = jnp.broadcast_to(
        decoder_3_ra, decoder_3_ra.shape[:3] + (32,)) * aa_atten_2
    ra_2 = apply_conv(p['ra2_conv1'], aa_atten_2_o)
    ra_2 = apply_conv(p['ra2_conv2'], ra_2)
    ra_2 = apply_conv(p['ra2_conv3'], ra_2)
    x_2 = ra_2 + decoder_3
    lateral_map_3 = resize_scale(x_2, 16)
    decoder_4 = resize_scale(x_2, 2)

    cfp_out_3 = cfp_fwd(p['CFP_1'], x2_rfb)
    decoder_4_ra = -1.0 * jax.nn.sigmoid(decoder_4) + 1.0
    aa_atten_1 = aa_kernel_fwd(p['aa_kernel_1'], cfp_out_3)
    aa_atten_1_o = jnp.broadcast_to(
        decoder_4_ra, decoder_4_ra.shape[:3] + (32,)) * aa_atten_1
    ra_1 = apply_conv(p['ra1_conv1'], aa_atten_1_o)
    ra_1 = apply_conv(p['ra1_conv2'], ra_1)
    ra_1 = apply_conv(p['ra1_conv3'], ra_1)
    x_1 = ra_1 + decoder_4
    lateral_map_5 = resize_scale(x_1, 8)

    final_1 = apply_conv(p['final_1'], lateral_map_1)
    final_2 = apply_conv(p['final_2'], lateral_map_2)
    final_3 = apply_conv(p['final_3'], lateral_map_3)
    final_5 = apply_conv(p['final_5'], lateral_map_5)
    out = (final_5 + final_3 + final_2 + final_1) / 4.0
    return jnp.transpose(out, (0, 3, 1, 2))      # back to NCHW at the exit


if __name__ == "__main__":
    key = jax.random.PRNGKey(0)
    pkey, xkey = jax.random.split(key)
    params = init_caranet(pkey, channel=32, num_classes=20)
    x = jax.random.normal(xkey, (1, 3, 64, 64), jnp.float32)
    out = caranet_fwd(params, x)
    out = jax.block_until_ready(out)
    assert out.shape == (1, 20, 64, 64), out.shape
    assert bool(jnp.isfinite(out).all())
    print("KERNEL_OK")
</pallas_src>

<mosaic_0001>
module attributes {stable_mosaic.version = 11 : i64} {
  func.func @_matmul_fullk_kernel(%arg0: i32, %arg1: i32, %arg2: memref<256x147xbf16, #tpu.memory_space<vmem>>, %arg3: memref<147x64xbf16, #tpu.memory_space<vmem>>, %arg4: memref<256x64xf32, #tpu.memory_space<vmem>>) attributes {dimension_semantics = [#tpu.dimension_semantics<parallel>, #tpu.dimension_semantics<parallel>], iteration_bounds = array<i64: 4, 1>, scalar_prefetch = 0 : i64, scratch_operands = 0 : i64, tpu.core_type = #tpu.core_type<tc>, window_params = [{transform_indices = @transform_0, window_bounds = array<i64: 256, 147>}, {transform_indices = @transform_1, window_bounds = array<i64: 147, 64>}, {transform_indices = @transform_2, window_bounds = array<i64: 256, 64>}]} {
    %c0 = arith.constant 0 : index
    %c0_0 = arith.constant 0 : index
    %0 = vector.load %arg2[%c0, %c0_0] : memref<256x147xbf16, #tpu.memory_space<vmem>>, vector<256x147xbf16>
    %c0_1 = arith.constant 0 : index
    %c0_2 = arith.constant 0 : index
    %1 = vector.load %arg3[%c0_1, %c0_2] : memref<147x64xbf16, #tpu.memory_space<vmem>>, vector<147x64xbf16>
    %cst = arith.constant dense<0.000000e+00> : vector<256x64xf32>
    %2 = tpu.matmul %0, %1, %cst {dimension_numbers = #tpu.dot_dimension_numbers<[1], [0], [0], [1], [0, 0, 1, 1], [], []>} : vector<256x147xbf16>, vector<147x64xbf16>, vector<256x64xf32> -> vector<256x64xf32>
    %c0_3 = arith.constant 0 : index
    %c0_4 = arith.constant 0 : index
    %3 = vector.load %arg4[%c0_3, %c0_4] : memref<256x64xf32, #tpu.memory_space<vmem>>, vector<256x64xf32>
    tpu.vector_store %arg4[%c0_3, %c0_4], %2 {strides = array<i32>} : memref<256x64xf32, #tpu.memory_space<vmem>>, vector<256x64xf32>,
    return
  }
  func.func @transform_0(%arg0: i32, %arg1: i32) -> (i32, i32) {
    %c0_i32 = arith.constant 0 : i32
    %c0_i32_0 = arith.constant 0 : i32
    return %arg0, %c0_i32 : i32, i32
  }
  func.func @transform_1(%arg0: i32, %arg1: i32) -> (i32, i32) {
    %c0_i32 = arith.constant 0 : i32
    %c0_i32_0 = arith.constant 0 : i32
    return %c0_i32, %arg1 : i32, i32
  }
  func.func @transform_2(%arg0: i32, %arg1: i32) -> (i32, i32) {
    %c0_i32 = arith.constant 0 : i32
    return %arg0, %arg1 : i32, i32
  }
}

</mosaic_0001>

<llo_original>
// kernel: tpu_custom_call.1
$region0: #{tpu_custom_call.1}
  #allocation0 [shape = 'u32[]', space=smem, size = 0x4, offset = 0x4, fixed_abs, tag = 'smem constant byte address 0x4 - core index']
  #allocation1 [shape = 'u32[144,128]{1,0:T(1,128)}', space=vmem, size = 0x12000, scoped, tag = 'internal scratch']
  %s0 = inlined_call_operand.vmem [shape: bf16[1024,147], index: 0, kind: input, shape index: {}]
  %s1 = inlined_call_operand.vmem [shape: bf16[147,64], index: 1, kind: input, shape index: {}]
  %s2 = inlined_call_operand.vmem [shape: f32[1024,64], index: 2, kind: output, shape index: {}]
  %s3 = sld [smem:[#allocation0]]
  $region41: #{tpu_custom_call.1} parent=0
    _
  %s5 = ssub.s32 1, %s3
  %s6 = scalar_select 0, %s5, %s3
  loop: start=0, step=1, limit=6
  $region2: #{tpu_custom_call.1} parent=0 // loop_pre_header
    _
  $region3: #{tpu_custom_call.1} parent=0 // loop_header
    %s8 = sphi 0, %s12
    %p9 = scmp.ge.s32.totalorder %s8, 6
    %s15 = sphi 0, %s27
    %s16 = sphi 0, %s23
    %s17 = sphi 0, %s15
    %s18 = sphi 0, %s16
    %s19 = sphi 0, %s17
    %s20 = sphi 0, %s18
    %s30 = sphi 0, %s32
    %s33 = sphi 0, %s30
    %s34 = sphi 0, %s33
    %s50 = sphi 0, %s34
    %s56 = sphi 0, %s58
    %s59 = sphi 0, %s56
    %s60 = sphi 0, %s59
    %s76 = sphi 0, %s60
    %s84 = sphi 0, %s86
    %s87 = sphi 0, %s84
    %s88 = sphi 0, %s87
    %s104 = sphi 0, %s88
  $region4: #{tpu_custom_call.1} parent=0 // loop_header_branch
    %11 = sbr.rel (%p9) target = $region8
  $region5: #{tpu_custom_call.1} parent=0 // loop_body
    %s13 = ssub.s32 %s8, 1
    %s14 = ssub.s32 %s8, 2
    %s21 = sadd.s32 1, %s16
    %p22 = scmp.ge.s32.totalorder %s21, 1
    %s23 = scalar_select %p22, 0, %s21
    %s24 = sadd.s32 1, %s15
    %s25 = scalar_select %p22, %s24, %s15
    %p26 = scmp.ge.s32.totalorder %s25, 4
    %s27 = scalar_select %p26, 0, %s25
    %s28 = ssub.s32 %s15, %s27
    %p29 = scmp.eq.s32.totalorder %s28, 0
    %s31 = sadd.s32 %s30, 1
    %s32 = scalar_select %p29, %s30, %s31
    %p35 = pneg %p29
    %p36 = scmp.eq.s32.totalorder %s8, 3
    %p37 = por %p35, %p36
    %p38 = scmp.ne.s32.totalorder %s30, %s33
    %p39 = scmp.eq.s32.totalorder %s8, 0
    %p40 = por %p38, %p39
    %p41 = scmp.ne.s32.totalorder %s30, %s33
    %p42 = scmp.eq.s32.totalorder %s13, 3
    %p43 = por %p41, %p42
    %p44 = scmp.ne.s32.totalorder %s33, %s34
    %p45 = scmp.eq.s32.totalorder %s13, 0
    %p46 = por %p44, %p45
    %p47 = scmp.ne.s32.totalorder %s33, %s34
    %p48 = scmp.eq.s32.totalorder %s14, 3
    %p49 = por %p47, %p48
    %p51 = scmp.ne.s32.totalorder %s34, %s50
    %p52 = scmp.eq.s32.totalorder %s14, 0
    %p53 = por %p51, %p52
    %s54 = ssub.s32 %s16, %s23
    %p55 = scmp.eq.s32.totalorder %s54, 0
    %s57 = sadd.s32 %s56, 1
    %s58 = scalar_select %p55, %s56, %s57
    %p61 = pneg %p55
    %p62 = scmp.eq.s32.totalorder %s8, 3
    %p63 = por %p61, %p62
    %p64 = scmp.ne.s32.totalorder %s56, %s59
    %p65 = scmp.eq.s32.totalorder %s8, 0
    %p66 = por %p64, %p65
    %p67 = scmp.ne.s32.totalorder %s56, %s59
    %p68 = scmp.eq.s32.totalorder %s13, 3
    %p69 = por %p67, %p68
    %p70 = scmp.ne.s32.totalorder %s59, %s60
    %p71 = scmp.eq.s32.totalorder %s13, 0
    %p72 = por %p70, %p71
    %p73 = scmp.ne.s32.totalorder %s59, %s60
    %p74 = scmp.eq.s32.totalorder %s14, 3
    %p75 = por %p73, %p74
    %p77 = scmp.ne.s32.totalorder %s60, %s76
    %p78 = scmp.eq.s32.totalorder %s14, 0
    %p79 = por %p77, %p78
    %s80 = ssub.s32 %s15, %s27
    %s81 = ssub.s32 %s16, %s23
    %s82 = sor.u32 %s80, %s81
    %p83 = scmp.eq.s32.totalorder %s82, 0
    %s85 = sadd.s32 %s84, 1
    %s86 = scalar_select %p83, %s84, %s85
    %p89 = pneg %p83
    %p90 = scmp.eq.s32.totalorder %s8, 3
    %p91 = por %p89, %p90
    %p92 = scmp.ne.s32.totalorder %s84, %s87
    %p93 = scmp.eq.s32.totalorder %s8, 0
    %p94 = por %p92, %p93
    %p95 = scmp.ne.s32.totalorder %s84, %s87
    %p96 = scmp.eq.s32.totalorder %s13, 3
    %p97 = por %p95, %p96
    %p98 = scmp.ne.s32.totalorder %s87, %s88
    %p99 = scmp.eq.s32.totalorder %s13, 0
    %p100 = por %p98, %p99
    %p101 = scmp.ne.s32.totalorder %s87, %s88
    %p102 = scmp.eq.s32.totalorder %s14, 3
    %p103 = por %p101, %p102
    %p105 = scmp.ne.s32.totalorder %s88, %s104
    %p106 = scmp.eq.s32.totalorder %s14, 0
    %p107 = por %p105, %p106
    %p108 = scmp.le.s32.totalorder 1, %s8
    %p109 = scmp.lt.s32.totalorder %s8, 5
    %p110 = pnand %p108, %p109
    %p111 = pneg %p110
    // Predicated region
    $region9: #{tpu_custom_call.1} parent=5 // pred_check
      _
    $region10: #{tpu_custom_call.1} parent=5 // pred_check_branch
      %113 = sbr.rel (%p110) target = $region12
    $region11: #{tpu_custom_call.1} parent=5 // pred_region
      %s114 = ssub.s32 %s8, 1
      // Predicated region
      $region13: #{tpu_custom_call.1} parent=11 // pred_check
        %p115 = pneg %p72
      $region14: #{tpu_custom_call.1} parent=11 // pred_check_branch
        %117 = sbr.rel (%p115) target = $region16
      $region15: #{tpu_custom_call.1} parent=11 // pred_region
        %p118 = scmp.lt.s32.totalorder %s18, 0
        %s119 = scalar_select %p118, %s18, 0
        %s120 = smul.addr %s119, 4
        %s121 = scalar_lea.vmem %s1, %s120
      $region16: #{tpu_custom_call.1} parent=11 // pred_fallthru
        _
    $region12: #{tpu_custom_call.1} parent=5 // pred_fallthru
      _
    %p122 = scmp.lt.s32.totalorder %s8, 4
    // Predicated region
    $region17: #{tpu_custom_call.1} parent=5 // pred_check
      %p123 = pneg %p122
    $region18: #{tpu_custom_call.1} parent=5 // pred_check_branch
      %125 = sbr.rel (%p123) target = $region20
    $region19: #{tpu_custom_call.1} parent=5 // pred_region
      // Predicated region
      $region21: #{tpu_custom_call.1} parent=19 // pred_check
        %p126 = pneg %p40
      $region22: #{tpu_custom_call.1} parent=19 // pred_check_branch
        %128 = sbr.rel (%p126) target = $region24
      $region23: #{tpu_custom_call.1} parent=19 // pred_region
        %s129 = smul.u32 32, %s15
        %p130 = scmp.lt.s32.totalorder %s129, 127
        %s131 = scalar_select %p130, %s129, 127
        %s132 = smul.addr %s131, 2
        %s133 = smul.addr %s132, 4
        %s134 = scalar_lea.vmem %s0, %s133
        %s135 = smul.u32 32, %s15
      $region24: #{tpu_custom_call.1} parent=19 // pred_fallthru
        _
    $region20: #{tpu_custom_call.1} parent=5 // pred_fallthru
      _
    %p136 = scmp.le.s32.totalorder 1, %s8
    %p137 = scmp.lt.s32.totalorder %s8, 5
    %p138 = pnand %p136, %p137
    %p139 = pneg %p138
    // Predicated region
    $region25: #{tpu_custom_call.1} parent=5 // pred_check
      _
    $region26: #{tpu_custom_call.1} parent=5 // pred_check_branch
      %141 = sbr.rel (%p138) target = $region28
    $region27: #{tpu_custom_call.1} parent=5 // pred_region
      %s142 = ssub.s32 %s8, 1
      %s143 = smul.u32 32, %s17
      %p144 = scmp.lt.s32.totalorder %s143, 127
      %s145 = scalar_select %p144, %s143, 127
      %s146 = smul.addr %s145, 2
      %s147 = smul.addr %s146, 4
      %s148 = scalar_lea.vmem %s0, %s147
      %p149 = pneg %p46
      %p150 = pneg %p43
      %p151 = scmp.lt.s32.totalorder %s18, 0
      %s152 = scalar_select %p151, %s18, 0
      %s153 = smul.addr %s152, 4
      %s154 = scalar_lea.vmem %s1, %s153
      %p155 = pneg %p72
      %p156 = pneg %p69
      %p157 = pneg %p100
      %p158 = pneg %p97
      %s159 = smul.u32 32, %s17
      %p160 = scmp.lt.s32.totalorder %s159, 127
      %s161 = scalar_select %p160, %s159, 127
      %p162 = scmp.lt.s32.totalorder %s18, 0
      %s163 = scalar_select %p162, %s18, 0
      %s164 = sadd.s32 %s163, %s161
      %s165 = smul.addr %s164, 8
      %s166 = scalar_lea.vmem %s2, %s165
      %s167 = smul.u32 32, %s17
      %p168 = scmp.lt.s32.totalorder %s167, 127
      %s169 = scalar_select %p168, %s167, 127
      %s170 = smul.addr %s169, 2
      %s171 = smul.addr %s170, 4
      %s172 = scalar_lea.vmem %s0, %s171
      %s173 = smul.u32 32, %s17
      %p174 = scmp.lt.s32.totalorder %s18, 0
      %s175 = scalar_select %p174, %s18, 0
      %s176 = smul.addr %s175, 4
      %s177 = scalar_lea.vmem %s1, %s176
      %s178 = smul.u32 32, %s17
      %p179 = scmp.lt.s32.totalorder %s178, 127
      %s180 = scalar_select %p179, %s178, 127
      %p181 = scmp.lt.s32.totalorder %s18, 0
      %s182 = scalar_select %p181, %s18, 0
      %s183 = sadd.s32 %s182, %s180
      %s184 = smul.addr %s183, 8
      %s185 = scalar_lea.vmem %s2, %s184
      %s186 = smul.u32 32, %s17
      %v188 = vld [vmem:[%s172] sm:$0xff]
      %v189 = vld [vmem:[%s172 + $0x8] sm:$0xff]
      %v190 = vld [vmem:[%s172 + $0x10] sm:$0xff]
      %v191 = vld [vmem:[%s172 + $0x18] sm:$0xff]
      %v192 = vld [vmem:[%s172 + $0x20] sm:$0xff]
      %v193 = vld [vmem:[%s172 + $0x28] sm:$0xff]
      %v194 = vld [vmem:[%s172 + $0x30] sm:$0xff]
      %v195 = vld [vmem:[%s172 + $0x38] sm:$0xff]
      %v196 = vld [vmem:[%s172 + $0x40] sm:$0xff]
      %v197 = vld [vmem:[%s172 + $0x48] sm:$0xff]
      %v198 = vld [vmem:[%s172 + $0x50] sm:$0xff]
      %v199 = vld [vmem:[%s172 + $0x58] sm:$0xff]
      %v200 = vld [vmem:[%s172 + $0x60] sm:$0xff]
      %v201 = vld [vmem:[%s172 + $0x68] sm:$0xff]
      %v202 = vld [vmem:[%s172 + $0x70] sm:$0xff]
      %v203 = vld [vmem:[%s172 + $0x78] sm:$0xff]
      %v204 = vld [vmem:[%s172 + $0x80] sm:$0xff]
      %v205 = vld [vmem:[%s172 + $0x88] sm:$0xff]
      %v206 = vld [vmem:[%s172 + $0x90] sm:$0xff]
      %v207 = vld [vmem:[%s172 + $0x98] sm:$0xff]
      %v208 = vld [vmem:[%s172 + $0xa0] sm:$0xff]
      %v209 = vld [vmem:[%s172 + $0xa8] sm:$0xff]
      %v210 = vld [vmem:[%s172 + $0xb0] sm:$0xff]
      %v211 = vld [vmem:[%s172 + $0xb8] sm:$0xff]
      %v212 = vld [vmem:[%s172 + $0xc0] sm:$0xff]
      %v213 = vld [vmem:[%s172 + $0xc8] sm:$0xff]
      %v214 = vld [vmem:[%s172 + $0xd0] sm:$0xff]
      %v215 = vld [vmem:[%s172 + $0xd8] sm:$0xff]
      %v216 = vld [vmem:[%s172 + $0xe0] sm:$0xff]
      %v217 = vld [vmem:[%s172 + $0xe8] sm:$0xff]
      %v218 = vld [vmem:[%s172 + $0xf0] sm:$0xff]
      %v219 = vld [vmem:[%s172 + $0xf8] sm:$0xff]
      %v220 = vld [vmem:[%s177] sm:$0xf]
      %v221 = vld [vmem:[%s177 + $0x4] sm:$0xf]
      %v222 = vld [vmem:[%s177 + $0x8] sm:$0xf]
      %v223 = vld [vmem:[%s177 + $0xc] sm:$0xf]
      %v224 = vld [vmem:[%s177 + $0x10] sm:$0xf]
      %v225 = vld [vmem:[%s177 + $0x14] sm:$0xf]
      %v226 = vld [vmem:[%s177 + $0x18] sm:$0xf]
      %v227 = vld [vmem:[%s177 + $0x1c] sm:$0xf]
      %v228 = vld [vmem:[%s177 + $0x20] sm:$0xf]
      %v229 = vld [vmem:[%s177 + $0x24] sm:$0xf]
      %v230 = vld [vmem:[%s177 + $0x28] sm:$0xf]
      %v231 = vld [vmem:[%s177 + $0x2c] sm:$0xf]
      %v232 = vld [vmem:[%s177 + $0x30] sm:$0xf]
      %v233 = vld [vmem:[%s177 + $0x34] sm:$0xf]
      %v234 = vld [vmem:[%s177 + $0x38] sm:$0xf]
      %v235 = vld [vmem:[%s177 + $0x3c] sm:$0xf]
      %v236 = vld [vmem:[%s177 + $0x40] sm:$0xf]
      %v237 = vld [vmem:[%s177 + $0x44] sm:$0xf]
      %v238 = vld [vmem:[%s177 + $0x48] sm:$0x3]
      %v271 = vunpack.c.l.b16 %v188
      %v272 = vunpack.c.h.b16 %v188
      %v273 = vunpack.c.l.b16 %v189
      %v274 = vunpack.c.h.b16 %v189
      %v275 = vunpack.c.l.b16 %v190
      %v276 = vunpack.c.h.b16 %v190
      %v277 = vunpack.c.l.b16 %v191
      %v278 = vunpack.c.h.b16 %v191
      %v279 = vunpack.c.l.b16 %v192
      %v280 = vunpack.c.h.b16 %v192
      %v281 = vunpack.c.l.b16 %v193
      %v282 = vunpack.c.h.b16 %v193
      %v283 = vunpack.c.l.b16 %v194
      %v284 = vunpack.c.h.b16 %v194
      %v285 = vunpack.c.l.b16 %v195
      %v286 = vunpack.c.h.b16 %v195
      %v287 = vunpack.c.l.b16 %v196
      %v288 = vunpack.c.h.b16 %v196
      %v289 = vunpack.c.l.b16 %v197
      %v290 = vunpack.c.h.b16 %v197
      %v291 = vunpack.c.l.b16 %v198
      %v292 = vunpack.c.h.b16 %v198
      %v293 = vunpack.c.l.b16 %v199
      %v294 = vunpack.c.h.b16 %v199
      %v295 = vunpack.c.l.b16 %v200
      %v296 = vunpack.c.h.b16 %v200
      %v297 = vunpack.c.l.b16 %v201
      %v298 = vunpack.c.h.b16 %v201
      %v299 = vunpack.c.l.b16 %v202
      %v300 = vunpack.c.h.b16 %v202
      %v301 = vunpack.c.l.b16 %v203
      %v302 = vunpack.c.h.b16 %v203
      %v303 = vunpack.c.l.b16 %v204
      %v304 = vunpack.c.h.b16 %v204
      %v305 = vunpack.c.l.b16 %v205
      %v306 = vunpack.c.h.b16 %v205
      %v307 = vunpack.c.l.b16 %v206
      %v308 = vunpack.c.h.b16 %v206
      %v309 = vunpack.c.l.b16 %v207
      %v310 = vunpack.c.h.b16 %v207
      %v311 = vunpack.c.l.b16 %v208
      %v312 = vunpack.c.h.b16 %v208
      %v313 = vunpack.c.l.b16 %v209
      %v314 = vunpack.c.h.b16 %v209
      %v315 = vunpack.c.l.b16 %v210
      %v316 = vunpack.c.h.b16 %v210
      %v317 = vunpack.c.l.b16 %v211
      %v318 = vunpack.c.h.b16 %v211
      %v319 = vunpack.c.l.b16 %v212
      %v320 = vunpack.c.h.b16 %v212
      %v321 = vunpack.c.l.b16 %v213
      %v322 = vunpack.c.h.b16 %v213
      %v323 = vunpack.c.l.b16 %v214
      %v324 = vunpack.c.h.b16 %v214
      %v325 = vunpack.c.l.b16 %v215
      %v326 = vunpack.c.h.b16 %v215
      %v327 = vunpack.c.l.b16 %v216
      %v328 = vunpack.c.h.b16 %v216
      %v329 = vunpack.c.l.b16 %v217
      %v330 = vunpack.c.h.b16 %v217
      %v331 = vunpack.c.l.b16 %v218
      %v332 = vunpack.c.h.b16 %v218
      %v333 = vunpack.c.l.b16 %v219
      %v334 = vunpack.c.h.b16 %v219
      %v335 = vpack.c.b16 %v273, %v271
      %v336 = vpack.c.b16 %v274, %v272
      %v337 = vpack.c.b16 %v277, %v275
      %v338 = vpack.c.b16 %v278, %v276
      %v339 = vpack.c.b16 %v281, %v279
      %v340 = vpack.c.b16 %v282, %v280
      %v341 = vpack.c.b16 %v285, %v283
      %v342 = vpack.c.b16 %v286, %v284
      %v343 = vpack.c.b16 %v289, %v287
      %v344 = vpack.c.b16 %v290, %v288
      %v345 = vpack.c.b16 %v293, %v291
      %v346 = vpack.c.b16 %v294, %v292
      %v347 = vpack.c.b16 %v297, %v295
      %v348 = vpack.c.b16 %v298, %v296
      %v349 = vpack.c.b16 %v301, %v299
      %v350 = vpack.c.b16 %v302, %v300
      %v351 = vpack.c.b16 %v305, %v303
      %v352 = vpack.c.b16 %v306, %v304
      %v353 = vpack.c.b16 %v309, %v307
      %v354 = vpack.c.b16 %v310, %v308
      %v355 = vpack.c.b16 %v313, %v311
      %v356 = vpack.c.b16 %v314, %v312
      %v357 = vpack.c.b16 %v317, %v315
      %v358 = vpack.c.b16 %v318, %v316
      %v359 = vpack.c.b16 %v321, %v319
      %v360 = vpack.c.b16 %v322, %v320
      %v361 = vpack.c.b16 %v325, %v323
      %v362 = vpack.c.b16 %v326, %v324
      %v363 = vpack.c.b16 %v329, %v327
      %v364 = vpack.c.b16 %v330, %v328
      %v365 = vpack.c.b16 %v333, %v331
      %v366 = vpack.c.b16 %v334, %v332
      %v402 = vunpack.c.l.b16 %v220
      %v403 = vunpack.c.l.b16 %v221
      %v404 = vunpack.c.l.b16 %v222
      %v405 = vunpack.c.l.b16 %v223
      %v406 = vunpack.c.l.b16 %v224
      %v407 = vunpack.c.l.b16 %v225
      %v408 = vunpack.c.l.b16 %v226
      %v409 = vunpack.c.l.b16 %v227
      %v410 = vunpack.c.l.b16 %v228
      %v411 = vunpack.c.l.b16 %v229
      %v412 = vunpack.c.l.b16 %v230
      %v413 = vunpack.c.l.b16 %v231
      %v414 = vunpack.c.l.b16 %v232
      %v415 = vunpack.c.l.b16 %v233
      %v416 = vunpack.c.l.b16 %v234
      %v417 = vunpack.c.l.b16 %v235
      %v418 = vunpack.c.l.b16 %v236
      %v419 = vunpack.c.l.b16 %v237
      %v420 = vunpack.c.l.b16 %v238
      %v421 = vpack.c.b16 %v403, %v402
      %v422 = vpack.c.b16 %v405, %v404
      %v423 = vpack.c.b16 %v407, %v406
      %v424 = vpack.c.b16 %v409, %v408
      %v425 = vpack.c.b16 %v411, %v410
      %v426 = vpack.c.b16 %v413, %v412
      %v427 = vpack.c.b16 %v415, %v414
      %v428 = vpack.c.b16 %v417, %v416
      %v429 = vpack.c.b16 %v419, %v418
      %v430 = vpack.c.b16 %v420, %v420
      %vm440 = vcmask 154624
      %v442 = vsel %vm440, %v336, 0
      %v445 = vsel %vm440, %v338, 0
      %v448 = vsel %vm440, %v340, 0
      %v451 = vsel %vm440, %v342, 0
      %v454 = vsel %vm440, %v344, 0
      %v457 = vsel %vm440, %v346, 0
      %v460 = vsel %vm440, %v348, 0
      %v463 = vsel %vm440, %v350, 0
      %v466 = vsel %vm440, %v352, 0
      %v469 = vsel %vm440, %v354, 0
      %v472 = vsel %vm440, %v356, 0
      %v475 = vsel %vm440, %v358, 0
      %v478 = vsel %vm440, %v360, 0
      %v481 = vsel %vm440, %v362, 0
      %v484 = vsel %vm440, %v364, 0
      %v487 = vsel %vm440, %v366, 0
      %vm489 = vcmask 1040384
      %vm490 = vcmask 1041408
      %v491 = vsel %vm489, 4294967295, 65535
      %v492 = vsel %vm490, %v491, 0
      %v494 = vand.u32 %v430, %v492
      %496 = vmatprep.subr.bf16.mxu0 0
      %497 = vmatpush1.bf16.msra.mxu0 %v421
      %498 = vmatprep.subr.bf16.mxu0 0
      %499 = vmatpush1.bf16.msra.mxu0 %v422
      %500 = vmatprep.subr.bf16.mxu0 0
      %501 = vmatpush1.bf16.msra.mxu0 %v423
      %502 = vmatprep.subr.bf16.mxu0 0
      %503 = vmatpush1.bf16.msra.mxu0 %v424
      %504 = vmatprep.subr.bf16.mxu0 0
      %505 = vmatpush1.bf16.msra.mxu0 %v425
      %506 = vmatprep.subr.bf16.mxu0 0
      %507 = vmatpush1.bf16.msra.mxu0 %v426
      %508 = vmatprep.subr.bf16.mxu0 0
      %509 = vmatpush1.bf16.msra.mxu0 %v427
      %510 = vmatprep.subr.bf16.mxu0 0
      %511 = vmatpush1.bf16.msra.mxu0 %v428
      %512 = vmatprep.subr.bf16.mxu0 0
      %513 = vmatpush1.bf16.msra.mxu0 %v429
      %514 = vmatprep.subr.bf16.mxu0 0
      %515 = vmatpush1.bf16.msra.mxu0 %v494
      %516 = vmatprep.subr.bf16.mxu0 0
      %517 = vmatpush1.bf16.msra.mxu0 0
      %518 = vmatprep.subr.bf16.mxu0 0
      %519 = vmatpush1.bf16.msra.mxu0 0
      %520 = vmatprep.subr.bf16.mxu0 0
      %521 = vmatpush1.bf16.msra.mxu0 0
      %522 = vmatprep.subr.bf16.mxu0 0
      %523 = vmatpush1.bf16.msra.mxu0 0
      %524 = vmatprep.subr.bf16.mxu0 0
      %525 = vmatpush1.bf16.msra.mxu0 0
      %526 = vmatprep.subr.bf16.mxu0 0
      %527 = vmatpush1.bf16.msra.mxu0 0
      %528 = vmatprep.mubr.bf16.mxu0 %v442
      %529 = vmatmul.mubr.bf16.gmra.mrb[0].mxu0 %v335
      %v530 = vpop.f32.mrb[0].mxu0
      %v531 = vadd.f32 0.0, %v530
      %v532 = vpop.f32.mrb[0].mxu0
      %v533 = vpop.f32.mrb[0].mxu0
      %v534 = vadd.f32 0.0, %v533
      %v535 = vpop.f32.mrb[0].mxu0
      %536 = vmatprep.mubr.bf16.mxu0 %v445
      %537 = vmatmul.mubr.bf16.gmra.mrb[0].mxu0 %v337
      %v538 = vpop.f32.mrb[0].mxu0
      %v539 = vadd.f32 0.0, %v538
      %v540 = vpop.f32.mrb[0].mxu0
      %v541 = vpop.f32.mrb[0].mxu0
      %v542 = vadd.f32 0.0, %v541
      %v543 = vpop.f32.mrb[0].mxu0
      %544 = vmatprep.mubr.bf16.mxu0 %v448
      %545 = vmatmul.mubr.bf16.gmra.mrb[0].mxu0 %v339
      %v546 = vpop.f32.mrb[0].mxu0
      %v547 = vadd.f32 0.0, %v546
      %v548 = vpop.f32.mrb[0].mxu0
      %v549 = vpop.f32.mrb[0].mxu0
      %v550 = vadd.f32 0.0, %v549
      %v551 = vpop.f32.mrb[0].mxu0
      %552 = vmatprep.mubr.bf16.mxu0 %v451
      %553 = vmatmul.mubr.bf16.gmra.mrb[0].mxu0 %v341
      %v554 = vpop.f32.mrb[0].mxu0
      %v555 = vadd.f32 0.0, %v554
      %v556 = vpop.f32.mrb[0].mxu0
      %v557 = vpop.f32.mrb[0].mxu0
      %v558 = vadd.f32 0.0, %v557
      %v559 = vpop.f32.mrb[0].mxu0
      %560 = vmatprep.mubr.bf16.mxu0 %v454
      %561 = vmatmul.mubr.bf16.gmra.mrb[0].mxu0 %v343
      %v562 = vpop.f32.mrb[0].mxu0
      %v563 = vadd.f32 0.0, %v562
      %v564 = vpop.f32.mrb[0].mxu0
      %v565 = vpop.f32.mrb[0].mxu0
      %v566 = vadd.f32 0.0, %v565
      %v567 = vpop.f32.mrb[0].mxu0
      %568 = vmatprep.mubr.bf16.mxu0 %v457
      %569 = vmatmul.mubr.bf16.gmra.mrb[0].mxu0 %v345
      %v570 = vpop.f32.mrb[0].mxu0
      %v571 = vadd.f32 0.0, %v570
      %v572 = vpop.f32.mrb[0].mxu0
      %v573 = vpop.f32.mrb[0].mxu0
      %v574 = vadd.f32 0.0, %v573
      %v575 = vpop.f32.mrb[0].mxu0
      %576 = vmatprep.mubr.bf16.mxu0 %v460
      %577 = vmatmul.mubr.bf16.gmra.mrb[0].mxu0 %v347
      %v578 = vpop.f32.mrb[0].mxu0
      %v579 = vadd.f32 0.0, %v578
      %v580 = vpop.f32.mrb[0].mxu0
      %v581 = vpop.f32.mrb[0].mxu0
      %v582 = vadd.f32 0.0, %v581
      %v583 = vpop.f32.mrb[0].mxu0
      %584 = vmatprep.mubr.bf16.mxu0 %v463
      %585 = vmatmul.mubr.bf16.gmra.mrb[0].mxu0 %v349
      %v586 = vpop.f32.mrb[0].mxu0
      %v587 = vadd.f32 0.0, %v586
      %v588 = vpop.f32.mrb[0].mxu0
      %v589 = vpop.f32.mrb[0].mxu0
      %v590 = vadd.f32 0.0, %v589
      %v591 = vpop.f32.mrb[0].mxu0
      %592 = vmatprep.mubr.bf16.mxu0 %v466
      %593 = vmatmul.mubr.bf16.gmra.mrb[0].mxu0 %v351
      %v594 = vpop.f32.mrb[0].mxu0
      %v595 = vadd.f32 0.0, %v594
      %v596 = vpop.f32.mrb[0].mxu0
      %v597 = vpop.f32.mrb[0].mxu0
      %v598 = vadd.f32 0.0, %v597
      %v599 = vpop.f32.mrb[0].mxu0
      %600 = vmatprep.mubr.bf16.mxu0 %v469
      %601 = vmatmul.mubr.bf16.gmra.mrb[0].mxu0 %v353
      %v602 = vpop.f32.mrb[0].mxu0
      %v603 = vadd.f32 0.0, %v602
      %v604 = vpop.f32.mrb[0].mxu0
      %v605 = vpop.f32.mrb[0].mxu0
      %v606 = vadd.f32 0.0, %v605
      %v607 = vpop.f32.mrb[0].mxu0
      %608 = vmatprep.mubr.bf16.mxu0 %v472
      %609 = vmatmul.mubr.bf16.gmra.mrb[0].mxu0 %v355
      %v610 = vpop.f32.mrb[0].mxu0
      %v611 = vadd.f32 0.0, %v610
      %v612 = vpop.f32.mrb[0].mxu0
      %v613 = vpop.f32.mrb[0].mxu0
      %v614 = vadd.f32 0.0, %v613
      %v615 = vpop.f32.mrb[0].mxu0
      %616 = vmatprep.mubr.bf16.mxu0 %v475
      %617 = vmatmul.mubr.bf16.gmra.mrb[0].mxu0 %v357
      %v618 = vpop.f32.mrb[0].mxu0
      %v619 = vadd.f32 0.0, %v618
      %v620 = vpop.f32.mrb[0].mxu0
      %v621 = vpop.f32.mrb[0].mxu0
      %v622 = vadd.f32 0.0, %v621
      %v623 = vpop.f32.mrb[0].mxu0
      %624 = vmatprep.mubr.bf16.mxu0 %v478
      %625 = vmatmul.mubr.bf16.gmra.mrb[0].mxu0 %v359
      %v626 = vpop.f32.mrb[0].mxu0
      %v627 = vadd.f32 0.0, %v626
      %v628 = vpop.f32.mrb[0].mxu0
      %v629 = vpop.f32.mrb[0].mxu0
      %v630 = vadd.f32 0.0, %v629
      %v631 = vpop.f32.mrb[0].mxu0
      %632 = vmatprep.mubr.bf16.mxu0 %v481
      %633 = vmatmul.mubr.bf16.gmra.mrb[0].mxu0 %v361
      %v634 = vpop.f32.mrb[0].mxu0
      %v635 = vadd.f32 0.0, %v634
      %v636 = vpop.f32.mrb[0].mxu0
      %v637 = vpop.f32.mrb[0].mxu0
      %v638 = vadd.f32 0.0, %v637
      %v639 = vpop.f32.mrb[0].mxu0
      %640 = vmatprep.mubr.bf16.mxu0 %v484
      %641 = vmatmul.mubr.bf16.gmra.mrb[0].mxu0 %v363
      %v642 = vpop.f32.mrb[0].mxu0
      %v643 = vadd.f32 0.0, %v642
      %v644 = vpop.f32.mrb[0].mxu0
      %v645 = vpop.f32.mrb[0].mxu0
      %v646 = vadd.f32 0.0, %v645
      %v647 = vpop.f32.mrb[0].mxu0
      %648 = vmatprep.mubr.bf16.mxu0 %v487
      %649 = vmatmul.mubr.bf16.gmra.mrb[0].mxu0 %v365
      %v650 = vpop.f32.mrb[0].mxu0
      %v651 = vadd.f32 0.0, %v650
      %v652 = vpop.f32.mrb[0].mxu0
      %v653 = vpop.f32.mrb[0].mxu0
      %v654 = vadd.f32 0.0, %v653
      %v655 = vpop.f32.mrb[0].mxu0
      %656 = vdwg.mxu0
      %vm657 = vcmask 523264
      %658 = vst.msk [vmem:[%s185] sm:$0xff] %vm657, %v531
      %659 = vst.msk [vmem:[%s185 + $0x8] sm:$0xff] %vm657, %v534
      %660 = vst.msk [vmem:[%s185 + $0x10] sm:$0xff] %vm657, %v539
      %661 = vst.msk [vmem:[%s185 + $0x18] sm:$0xff] %vm657, %v542
      %662 = vst.msk [vmem:[%s185 + $0x20] sm:$0xff] %vm657, %v547
      %663 = vst.msk [vmem:[%s185 + $0x28] sm:$0xff] %vm657, %v550
      %664 = vst.msk [vmem:[%s185 + $0x30] sm:$0xff] %vm657, %v555
      %665 = vst.msk [vmem:[%s185 + $0x38] sm:$0xff] %vm657, %v558
      %666 = vst.msk [vmem:[%s185 + $0x40] sm:$0xff] %vm657, %v563
      %667 = vst.msk [vmem:[%s185 + $0x48] sm:$0xff] %vm657, %v566
      %668 = vst.msk [vmem:[%s185 + $0x50] sm:$0xff] %vm657, %v571
      %669 = vst.msk [vmem:[%s185 + $0x58] sm:$0xff] %vm657, %v574
      %670 = vst.msk [vmem:[%s185 + $0x60] sm:$0xff] %vm657, %v579
      %671 = vst.msk [vmem:[%s185 + $0x68] sm:$0xff] %vm657, %v582
      %672 = vst.msk [vmem:[%s185 + $0x70] sm:$0xff] %vm657, %v587
      %673 = vst.msk [vmem:[%s185 + $0x78] sm:$0xff] %vm657, %v590
      %674 = vst.msk [vmem:[%s185 + $0x80] sm:$0xff] %vm657, %v595
      %675 = vst.msk [vmem:[%s185 + $0x88] sm:$0xff] %vm657, %v598
      %676 = vst.msk [vmem:[%s185 + $0x90] sm:$0xff] %vm657, %v603
      %677 = vst.msk [vmem:[%s185 + $0x98] sm:$0xff] %vm657, %v606
      %678 = vst.msk [vmem:[%s185 + $0xa0] sm:$0xff] %vm657, %v611
      %679 = vst.msk [vmem:[%s185 + $0xa8] sm:$0xff] %vm657, %v614
      %680 = vst.msk [vmem:[%s185 + $0xb0] sm:$0xff] %vm657, %v619
      %681 = vst.msk [vmem:[%s185 + $0xb8] sm:$0xff] %vm657, %v622
      %682 = vst.msk [vmem:[%s185 + $0xc0] sm:$0xff] %vm657, %v627
      %683 = vst.msk [vmem:[%s185 + $0xc8] sm:$0xff] %vm657, %v630
      %684 = vst.msk [vmem:[%s185 + $0xd0] sm:$0xff] %vm657, %v635
      %685 = vst.msk [vmem:[%s185 + $0xd8] sm:$0xff] %vm657, %v638
      %686 = vst.msk [vmem:[%s185 + $0xe0] sm:$0xff] %vm657, %v643
      %687 = vst.msk [vmem:[%s185 + $0xe8] sm:$0xff] %vm657, %v646
      %688 = vst.msk [vmem:[%s185 + $0xf0] sm:$0xff] %vm657, %v651
      %689 = vst.msk [vmem:[%s185 + $0xf8] sm:$0xff] %vm657, %v654
      %s690 = smul.u32 32, %s17
      %p691 = scmp.lt.s32.totalorder %s690, 127
      %s692 = scalar_select %p691, %s690, 127
      %p693 = scmp.lt.s32.totalorder %s18, 0
      %s694 = scalar_select %p693, %s18, 0
      %s695 = sadd.s32 %s694, %s692
      %s696 = smul.addr %s695, 8
      %s697 = scalar_lea.vmem %s2, %s696
      // Predicated region
      $region29: #{tpu_custom_call.1} parent=27 // pred_check
        %p698 = pneg %p97
      $region30: #{tpu_custom_call.1} parent=27 // pred_check_branch
        %700 = sbr.rel (%p698) target = $region32
      $region31: #{tpu_custom_call.1} parent=27 // pred_region
        %s701 = smul.u32 32, %s17
      $region32: #{tpu_custom_call.1} parent=27 // pred_fallthru
        _
    $region28: #{tpu_custom_call.1} parent=5 // pred_fallthru
      _
    %p702 = scmp.le.s32.totalorder 2, %s8
    // Predicated region
    $region33: #{tpu_custom_call.1} parent=5 // pred_check
      %p703 = pneg %p702
    $region34: #{tpu_custom_call.1} parent=5 // pred_check_branch
      %705 = sbr.rel (%p703) target = $region36
    $region35: #{tpu_custom_call.1} parent=5 // pred_region
      %s706 = ssub.s32 %s8, 2
      // Predicated region
      $region37: #{tpu_custom_call.1} parent=35 // pred_check
        %p707 = pneg %p103
      $region38: #{tpu_custom_call.1} parent=35 // pred_check_branch
        %709 = sbr.rel (%p707) target = $region40
      $region39: #{tpu_custom_call.1} parent=35 // pred_region
        %s710 = smul.u32 32, %s19
        %p711 = scmp.lt.s32.totalorder %s710, 127
        %s712 = scalar_select %p711, %s710, 127
        %p713 = scmp.lt.s32.totalorder %s20, 0
        %s714 = scalar_select %p713, %s20, 0
        %s715 = sadd.s32 %s714, %s712
        %s716 = smul.addr %s715, 8
        %s717 = scalar_lea.vmem %s2, %s716
      $region40: #{tpu_custom_call.1} parent=35 // pred_fallthru
        _
    $region36: #{tpu_custom_call.1} parent=5 // pred_fallthru
      _
  $region6: #{tpu_custom_call.1} parent=0 // loop_footer
    %s12 = sadd.s32 1, %s8
  $region7: #{tpu_custom_call.1} parent=0 // loop_footer_branch
    %7 = sbr.rel target = $region3
  $region8: #{tpu_custom_call.1} parent=0 // loop_exit
    _

</llo_original>
